<compile_context>
chip_gen: v7x
topology: tpu7x:2x2x1
jax: 0.10.0
libtpu: 0.0.40
codegen_flags: <defaults>
</compile_context>

<pallas_src>
import jax
import jax.numpy as jnp
from jax.experimental import pallas as pl
from jax.experimental.pallas import tpu as pltpu

_LANE = 128
_SUBLANE = 8


def _round_up(n, m):
    return ((n + m - 1) // m) * m


def _cdiv(a, b):
    return (a + b - 1) // b


def _pad2d(a, rows, cols):
    r, c = a.shape
    if r == rows and c == cols:
        return a
    return jnp.pad(a, ((0, rows - r), (0, cols - c)))


def _mlp_kernel(x_ref, w1_ref, b1_ref, w2_ref, b2_ref, w3_ref, b3_ref,
                out_ref, feat_ref):
    # x tile arrives as f32 [TB, D]; cast to bf16 in VMEM (no HBM round trip).
    x = x_ref[...].astype(jnp.bfloat16)
    # Three MXU matmuls (bf16 in, f32 acc) + VPU bias/ReLU in f32.
    h1 = jnp.dot(x, w1_ref[...], preferred_element_type=jnp.float32)
    h1 = jnp.maximum(h1 + b1_ref[...], 0.0)
    h2 = jnp.dot(h1.astype(jnp.bfloat16), w2_ref[...],
                 preferred_element_type=jnp.float32)
    h2 = jnp.maximum(h2 + b2_ref[...], 0.0)
    h2b = h2.astype(jnp.bfloat16)
    feat_ref[...] = h2b                       # bf16 features (halved HBM write)
    logits = jnp.dot(h2b, w3_ref[...],
                     preferred_element_type=jnp.float32) + b3_ref[...]
    out_ref[...] = logits.astype(out_ref.dtype)   # bf16 padded logits slab


def _mlp_kernel_logits_only(x_ref, w1_ref, b1_ref, w2_ref, b2_ref, w3_ref,
                            b3_ref, out_ref):
    x = x_ref[...].astype(jnp.bfloat16)
    h1 = jnp.dot(x, w1_ref[...], preferred_element_type=jnp.float32)
    h1 = jnp.maximum(h1 + b1_ref[...], 0.0)
    h2 = jnp.dot(h1.astype(jnp.bfloat16), w2_ref[...],
                 preferred_element_type=jnp.float32)
    h2 = jnp.maximum(h2 + b2_ref[...], 0.0)
    logits = jnp.dot(h2.astype(jnp.bfloat16), w3_ref[...],
                     preferred_element_type=jnp.float32) + b3_ref[...]
    out_ref[...] = logits.astype(out_ref.dtype)


def prepare_params(params):
    """Pad/cast weights to their kernel layouts ONCE (not per forward call).

    Weights are stored [in, out] (transposed vs. torch). Hidden/output lane
    dims are zero-padded to multiples of 128; the input (contraction) dim of
    w1 is left unpadded so x needs no lane padding at all.
    """
    w1, b1, w2, b2, w3, b3 = params
    D, H = w1.shape
    O = w3.shape[1]
    Hp, Op = _round_up(H, _LANE), _round_up(O, _LANE)
    return {
        "D": D, "H": H, "O": O, "Hp": Hp, "Op": Op,
        "w1": _pad2d(w1, D, Hp).astype(jnp.bfloat16),
        "b1": _pad2d(b1.reshape(1, -1).astype(jnp.float32), 1, Hp),
        "w2": _pad2d(w2, Hp, Hp).astype(jnp.bfloat16),
        "b2": _pad2d(b2.reshape(1, -1).astype(jnp.float32), 1, Hp),
        "w3": _pad2d(w3, Hp, Op).astype(jnp.bfloat16),
        "b3": _pad2d(b3.reshape(1, -1).astype(jnp.float32), 1, Op),
    }


def simple_classifier_forward(x, prep, *, max_batch_tile=2048,
                              min_grid_steps=2, return_features=True):
    """Mirrors SimpleClassifier.forward: returns (out_f32, features_bf16).

    Note: features are returned in bfloat16 (padded-slab write is halved);
    logits are returned in float32 after slicing the padded bf16 slab.
    """
    B = x.shape[0]
    D, H, O = prep["D"], prep["H"], prep["O"]
    Hp, Op = prep["Hp"], prep["Op"]

    x2d = x.reshape(B, -1).astype(jnp.float32)   # x.view(x.size(0), -1)
    assert x2d.shape[1] == D, "flattened input size must match w1 fan-in"

    # Balanced batch tiling: tiles of TB rows (multiple of 8 sublanes), at
    # least `min_grid_steps` tiles when the batch is large enough so the
    # "parallel" batch axis shards across both v7x TensorCores. Padding waste
    # is bounded to <8 rows per tile.
    n_tiles = _cdiv(B, max_batch_tile)
    if B >= 4 * min_grid_steps * _SUBLANE:
        n_tiles = max(n_tiles, min_grid_steps)
    TB = _round_up(_cdiv(B, n_tiles), _SUBLANE)
    Bp = n_tiles * TB
    if Bp != B:
        x2d = jnp.pad(x2d, ((0, Bp - B), (0, 0)))

    grid = (n_tiles,)

    def _resident(shape):
        # Constant index_map -> weight/bias stays VMEM-resident across steps.
        return pl.BlockSpec(shape, lambda i: (0, 0))

    in_specs = [
        pl.BlockSpec((TB, D), lambda i: (i, 0)),     # x: tiled over batch
        _resident((D, Hp)), _resident((1, Hp)),      # w1, b1
        _resident((Hp, Hp)), _resident((1, Hp)),     # w2, b2
        _resident((Hp, Op)), _resident((1, Op)),     # w3, b3
    ]
    logits_spec = pl.BlockSpec((TB, Op), lambda i: (i, 0))
    feats_spec = pl.BlockSpec((TB, Hp), lambda i: (i, 0))

    flops = 2 * Bp * (D * Hp + Hp * Hp + Hp * Op)
    bytes_accessed = (
        4 * Bp * D                                                # x (f32)
        + 2 * (D * Hp + Hp * Hp + Hp * Op)                        # weights bf16
        + 4 * (2 * Hp + Op)                                       # biases f32
        + 2 * Bp * Op                                             # logits bf16
        + (2 * Bp * Hp if return_features else 0))                # feats bf16
    cost = pl.CostEstimate(flops=flops, transcendentals=0,
                           bytes_accessed=bytes_accessed)
    cparams = pltpu.CompilerParams(dimension_semantics=("parallel",))

    args = (x2d, prep["w1"], prep["b1"], prep["w2"], prep["b2"],
            prep["w3"], prep["b3"])

    if return_features:
        out_p, feats_p = pl.pallas_call(
            _mlp_kernel,
            out_shape=(jax.ShapeDtypeStruct((Bp, Op), jnp.bfloat16),
                       jax.ShapeDtypeStruct((Bp, Hp), jnp.bfloat16)),
            grid=grid,
            in_specs=in_specs,
            out_specs=(logits_spec, feats_spec),
            compiler_params=cparams,
            cost_estimate=cost,
        )(*args)
        return out_p[:B, :O].astype(jnp.float32), feats_p[:B, :H]

    out_p = pl.pallas_call(
        _mlp_kernel_logits_only,
        out_shape=jax.ShapeDtypeStruct((Bp, Op), jnp.bfloat16),
        grid=grid,
        in_specs=in_specs,
        out_specs=logits_spec,
        compiler_params=cparams,
        cost_estimate=cost,
    )(*args)
    return out_p[:B, :O].astype(jnp.float32), None


def init_params(key, input_size=100, hidden_size=128, output_size=5):
    """Deterministic init. Weights stored as [in, out] (transposed vs. torch)."""
    k1, k2, k3, k4, k5, k6 = jax.random.split(key, 6)

    def linear(kw, kb, fan_in, fan_out):
        bound = 1.0 / jnp.sqrt(fan_in)
        w = jax.random.uniform(kw, (fan_in, fan_out), jnp.float32, -bound, bound)
        b = jax.random.uniform(kb, (1, fan_out), jnp.float32, -bound, bound)
        return w, b

    w1, b1 = linear(k1, k2, input_size, hidden_size)
    w2, b2 = linear(k3, k4, hidden_size, hidden_size)
    w3, b3 = linear(k5, k6, hidden_size, output_size)
    return (w1, b1, w2, b2, w3, b3)


def reference_forward(x, params):
    B = x.shape[0]
    x2d = x.reshape(B, -1).astype(jnp.float32)
    w1, b1, w2, b2, w3, b3 = params
    h1 = jnp.maximum(x2d @ w1 + b1, 0.0)
    h2 = jnp.maximum(h1 @ w2 + b2, 0.0)
    return h2 @ w3 + b3, h2


if __name__ == "__main__":
    key = jax.random.PRNGKey(0)
    kx, kp, kx2 = jax.random.split(key, 3)

    input_size, hidden_size, output_size = 100, 128, 5
    # 4-D input; forward flattens to [B, 100] just like x.view(x.size(0), -1).
    x = jax.random.normal(kx, (8, 4, 5, 5), dtype=jnp.float32)
    raw_params = init_params(kp, input_size, hidden_size, output_size)
    prep = prepare_params(raw_params)   # pad/cast once, reused across calls

    out, feats = simple_classifier_forward(x, prep)
    out = jax.block_until_ready(out)
    feats = jax.block_until_ready(feats)

    ref_out, ref_feats = reference_forward(x, raw_params)
    assert out.shape == (8, output_size) and feats.shape == (8, hidden_size)
    # bf16 matmul operands / bf16 feature output with f32 accumulation.
    assert jnp.allclose(out, ref_out, atol=3e-2, rtol=3e-2)
    assert jnp.allclose(feats.astype(jnp.float32), ref_feats, atol=3e-2, rtol=3e-2)

    # Logits-only variant (skips the features HBM write stream).
    out_only, no_feats = simple_classifier_forward(x, prep, return_features=False)
    out_only = jax.block_until_ready(out_only)
    assert no_feats is None
    assert jnp.allclose(out_only, out, atol=1e-6, rtol=1e-6)

    # Awkward batch: exercises batch padding + the >=2-step grid (v7x 2 TCs).
    x2 = jax.random.normal(kx2, (72, 4, 5, 5), dtype=jnp.float32)
    out2, feats2 = simple_classifier_forward(x2, prep)
    out2 = jax.block_until_ready(out2)
    ref_out2, ref_feats2 = reference_forward(x2, raw_params)
    assert out2.shape == (72, output_size) and feats2.shape == (72, hidden_size)
    assert jnp.allclose(out2, ref_out2, atol=3e-2, rtol=3e-2)
    assert jnp.allclose(feats2.astype(jnp.float32), ref_feats2, atol=3e-2, rtol=3e-2)

    print("KERNEL_OK")
</pallas_src>

<mosaic_0001>
module attributes {stable_mosaic.version = 11 : i64} {
  func.func @_mlp_kernel(%arg0: i32, %arg1: memref<8x100xf32, #tpu.memory_space<vmem>>, %arg2: memref<100x128xbf16, #tpu.memory_space<vmem>>, %arg3: memref<1x128xf32, #tpu.memory_space<vmem>>, %arg4: memref<128x128xbf16, #tpu.memory_space<vmem>>, %arg5: memref<1x128xf32, #tpu.memory_space<vmem>>, %arg6: memref<128x128xbf16, #tpu.memory_space<vmem>>, %arg7: memref<1x128xf32, #tpu.memory_space<vmem>>, %arg8: memref<8x128xbf16, #tpu.memory_space<vmem>>, %arg9: memref<8x128xbf16, #tpu.memory_space<vmem>>) attributes {dimension_semantics = [#tpu.dimension_semantics<parallel>], iteration_bounds = array<i64: 1>, scalar_prefetch = 0 : i64, scratch_operands = 0 : i64, tpu.core_type = #tpu.core_type<tc>, window_params = [{transform_indices = @transform_0, window_bounds = array<i64: 8, 100>}, {pipeline_mode = #tpu.pipeline_mode<synchronous>, transform_indices = @transform_1, window_bounds = array<i64: 100, 128>}, {pipeline_mode = #tpu.pipeline_mode<synchronous>, transform_indices = @transform_2, window_bounds = array<i64: 1, 128>}, {pipeline_mode = #tpu.pipeline_mode<synchronous>, transform_indices = @transform_3, window_bounds = array<i64: 128, 128>}, {pipeline_mode = #tpu.pipeline_mode<synchronous>, transform_indices = @transform_4, window_bounds = array<i64: 1, 128>}, {pipeline_mode = #tpu.pipeline_mode<synchronous>, transform_indices = @transform_5, window_bounds = array<i64: 128, 128>}, {pipeline_mode = #tpu.pipeline_mode<synchronous>, transform_indices = @transform_6, window_bounds = array<i64: 1, 128>}, {transform_indices = @transform_7, window_bounds = array<i64: 8, 128>}, {transform_indices = @transform_8, window_bounds = array<i64: 8, 128>}]} {
    %c0 = arith.constant 0 : index
    %c0_0 = arith.constant 0 : index
    %0 = vector.load %arg1[%c0, %c0_0] : memref<8x100xf32, #tpu.memory_space<vmem>>, vector<8x100xf32>
    %1 = arith.truncf %0 : vector<8x100xf32> to vector<8x100xbf16>
    %c0_1 = arith.constant 0 : index
    %c0_2 = arith.constant 0 : index
    %2 = vector.load %arg2[%c0_1, %c0_2] : memref<100x128xbf16, #tpu.memory_space<vmem>>, vector<100x128xbf16>
    %cst = arith.constant dense<0.000000e+00> : vector<8x128xf32>
    %3 = tpu.matmul %1, %2, %cst {dimension_numbers = #tpu.dot_dimension_numbers<[1], [0], [0], [1], [0, 0, 1, 1], [], []>} : vector<8x100xbf16>, vector<100x128xbf16>, vector<8x128xf32> -> vector<8x128xf32>
    %c0_3 = arith.constant 0 : index
    %c0_4 = arith.constant 0 : index
    %4 = vector.load %arg3[%c0_3, %c0_4] : memref<1x128xf32, #tpu.memory_space<vmem>>, vector<1x128xf32>
    %5 = vector.broadcast %4 : vector<1x128xf32> to vector<8x128xf32>
    %6 = arith.addf %3, %5 : vector<8x128xf32>
    %cst_5 = arith.constant 0.000000e+00 : f32
    %7 = vector.broadcast %cst_5 : f32 to vector<8x128xf32>
    %8 = arith.maximumf %6, %7 : vector<8x128xf32>
    %9 = arith.truncf %8 : vector<8x128xf32> to vector<8x128xbf16>
    %c0_6 = arith.constant 0 : index
    %c0_7 = arith.constant 0 : index
    %10 = vector.load %arg4[%c0_6, %c0_7] : memref<128x128xbf16, #tpu.memory_space<vmem>>, vector<128x128xbf16>
    %cst_8 = arith.constant dense<0.000000e+00> : vector<8x128xf32>
    %11 = tpu.matmul %9, %10, %cst_8 {dimension_numbers = #tpu.dot_dimension_numbers<[1], [0], [0], [1], [0, 0, 1, 1], [], []>} : vector<8x128xbf16>, vector<128x128xbf16>, vector<8x128xf32> -> vector<8x128xf32>
    %c0_9 = arith.constant 0 : index
    %c0_10 = arith.constant 0 : index
    %12 = vector.load %arg5[%c0_9, %c0_10] : memref<1x128xf32, #tpu.memory_space<vmem>>, vector<1x128xf32>
    %13 = vector.broadcast %12 : vector<1x128xf32> to vector<8x128xf32>
    %14 = arith.addf %11, %13 : vector<8x128xf32>
    %cst_11 = arith.constant 0.000000e+00 : f32
    %15 = vector.broadcast %cst_11 : f32 to vector<8x128xf32>
    %16 = arith.maximumf %14, %15 : vector<8x128xf32>
    %17 = arith.truncf %16 : vector<8x128xf32> to vector<8x128xbf16>
    %c0_12 = arith.constant 0 : index
    %c0_13 = arith.constant 0 : index
    %18 = vector.load %arg9[%c0_12, %c0_13] : memref<8x128xbf16, #tpu.memory_space<vmem>>, vector<8x128xbf16>
    tpu.vector_store %arg9[%c0_12, %c0_13], %17 {strides = array<i32>} : memref<8x128xbf16, #tpu.memory_space<vmem>>, vector<8x128xbf16>,
    %c0_14 = arith.constant 0 : index
    %c0_15 = arith.constant 0 : index
    %19 = vector.load %arg6[%c0_14, %c0_15] : memref<128x128xbf16, #tpu.memory_space<vmem>>, vector<128x128xbf16>
    %cst_16 = arith.constant dense<0.000000e+00> : vector<8x128xf32>
    %20 = tpu.matmul %17, %19, %cst_16 {dimension_numbers = #tpu.dot_dimension_numbers<[1], [0], [0], [1], [0, 0, 1, 1], [], []>} : vector<8x128xbf16>, vector<128x128xbf16>, vector<8x128xf32> -> vector<8x128xf32>
    %c0_17 = arith.constant 0 : index
    %c0_18 = arith.constant 0 : index
    %21 = vector.load %arg7[%c0_17, %c0_18] : memref<1x128xf32, #tpu.memory_space<vmem>>, vector<1x128xf32>
    %22 = vector.broadcast %21 : vector<1x128xf32> to vector<8x128xf32>
    %23 = arith.addf %20, %22 : vector<8x128xf32>
    %24 = arith.truncf %23 : vector<8x128xf32> to vector<8x128xbf16>
    %c0_19 = arith.constant 0 : index
    %c0_20 = arith.constant 0 : index
    %25 = vector.load %arg8[%c0_19, %c0_20] : memref<8x128xbf16, #tpu.memory_space<vmem>>, vector<8x128xbf16>
    tpu.vector_store %arg8[%c0_19, %c0_20], %24 {strides = array<i32>} : memref<8x128xbf16, #tpu.memory_space<vmem>>, vector<8x128xbf16>,
    return
  }
  func.func @transform_0(%arg0: i32) -> (i32, i32) {
    %c0_i32 = arith.constant 0 : i32
    %c0_i32_0 = arith.constant 0 : i32
    return %arg0, %c0_i32 : i32, i32
  }
  func.func @transform_1(%arg0: i32) -> (i32, i32) {
    %c0_i32 = arith.constant 0 : i32
    %c0_i32_0 = arith.constant 0 : i32
    %c0_i32_1 = arith.constant 0 : i32
    return %c0_i32, %c0_i32_0 : i32, i32
  }
  func.func @transform_2(%arg0: i32) -> (i32, i32) {
    %c0_i32 = arith.constant 0 : i32
    %c0_i32_0 = arith.constant 0 : i32
    %c0_i32_1 = arith.constant 0 : i32
    return %c0_i32, %c0_i32_0 : i32, i32
  }
  func.func @transform_3(%arg0: i32) -> (i32, i32) {
    %c0_i32 = arith.constant 0 : i32
    %c0_i32_0 = arith.constant 0 : i32
    %c0_i32_1 = arith.constant 0 : i32
    return %c0_i32, %c0_i32_0 : i32, i32
  }
  func.func @transform_4(%arg0: i32) -> (i32, i32) {
    %c0_i32 = arith.constant 0 : i32
    %c0_i32_0 = arith.constant 0 : i32
    %c0_i32_1 = arith.constant 0 : i32
    return %c0_i32, %c0_i32_0 : i32, i32
  }
  func.func @transform_5(%arg0: i32) -> (i32, i32) {
    %c0_i32 = arith.constant 0 : i32
    %c0_i32_0 = arith.constant 0 : i32
    %c0_i32_1 = arith.constant 0 : i32
    return %c0_i32, %c0_i32_0 : i32, i32
  }
  func.func @transform_6(%arg0: i32) -> (i32, i32) {
    %c0_i32 = arith.constant 0 : i32
    %c0_i32_0 = arith.constant 0 : i32
    %c0_i32_1 = arith.constant 0 : i32
    return %c0_i32, %c0_i32_0 : i32, i32
  }
  func.func @transform_7(%arg0: i32) -> (i32, i32) {
    %c0_i32 = arith.constant 0 : i32
    %c0_i32_0 = arith.constant 0 : i32
    return %arg0, %c0_i32 : i32, i32
  }
  func.func @transform_8(%arg0: i32) -> (i32, i32) {
    %c0_i32 = arith.constant 0 : i32
    %c0_i32_0 = arith.constant 0 : i32
    return %arg0, %c0_i32 : i32, i32
  }
}

</mosaic_0001>

<llo_original>
// kernel: tpu_custom_call.1
$region0: #{tpu_custom_call.1}
  #allocation0 [shape = 'u32[]', space=smem, size = 0x4, offset = 0x4, fixed_abs, tag = 'smem constant byte address 0x4 - core index']
  #allocation1 [shape = 'u32[144,128]{1,0:T(1,128)}', space=vmem, size = 0x12000, scoped, tag = 'internal scratch']
  %s0 = inlined_call_operand.hbm [shape: f32[8,100], index: 0, kind: input, shape index: {}]
  %s1 = inlined_call_operand.hbm [shape: bf16[100,128], index: 1, kind: input, shape index: {}]
  %s2 = inlined_call_operand.vmem [shape: f32[1,128], index: 2, kind: input, shape index: {}]
  %s3 = inlined_call_operand.hbm [shape: bf16[128,128], index: 3, kind: input, shape index: {}]
  %s4 = inlined_call_operand.vmem [shape: f32[1,128], index: 4, kind: input, shape index: {}]
  %s5 = inlined_call_operand.hbm [shape: bf16[128,128], index: 5, kind: input, shape index: {}]
  %s6 = inlined_call_operand.vmem [shape: f32[1,128], index: 6, kind: input, shape index: {}]
  %s7 = inlined_call_operand.hbm [shape: bf16[8,128], index: 7, kind: output, shape index: {0}]
  %s8 = inlined_call_operand.hbm [shape: bf16[8,128], index: 8, kind: output, shape index: {1}]
  %9 = xla_tuple %s7, %s8
  %s10 = sld [smem:[#allocation0]]
  $region62: #{tpu_custom_call.1} parent=0
    _
  %s12 = ssub.s32 1, %s10
  %s13 = scalar_select 0, %s12, %s10
  $region1: #{tpu_custom_call.1} parent=0
    #allocation2 [shape = 'u8[4096]{0}', space=vmem, size = 0x1000, scoped, tag = 'input window, operand 0, single buffered']
    #allocation3 [shape = 's32[1]{0}', space=sflag, size = 0x4, scoped, tag = 'scoped memory for tpu_custom_call.1']
    #allocation4 [shape = 's32[1]{0}', space=sflag, size = 0x4, scoped, tag = 'scoped memory for tpu_custom_call.1']
    #allocation5 [shape = 'u8[26624]{0}', space=vmem, size = 0x6800, scoped, tag = 'input window, operand 1, single buffered']
    #allocation6 [shape = 's32[1]{0}', space=sflag, size = 0x4, scoped, tag = 'scoped memory for tpu_custom_call.1']
    #allocation7 [shape = 'u8[32768]{0}', space=vmem, size = 0x8000, scoped, tag = 'input window, operand 3, single buffered']
    #allocation8 [shape = 'u8[32768]{0}', space=vmem, size = 0x8000, scoped, tag = 'input window, operand 5, single buffered']
    #allocation9 [shape = 's32[1]{0}', space=sflag, size = 0x4, scoped, tag = 'scoped memory for tpu_custom_call.1']
    #allocation10 [shape = 'u8[2048]{0}', space=vmem, size = 0x800, scoped, tag = 'output window, operand 0, single buffered']
    #allocation11 [shape = 'u8[2048]{0}', space=vmem, size = 0x800, scoped, tag = 'output window, operand 1, single buffered']
    #allocation12 [shape = 's32[1]{0}', space=sflag, size = 0x4, scoped, tag = 'scoped memory for tpu_custom_call.1']
    %14 = vsyncpa [#allocation3], 0
    %15 = vsyncpa [#allocation6], 0
    %16 = vsyncpa [#allocation9], 0
    %17 = vsyncpa [#allocation4], 0
    %18 = vsyncpa [#allocation12], 0
    // Predicated region
    $region2: #{tpu_custom_call.1} parent=1 // pred_check
      _
    $region3: #{tpu_custom_call.1} parent=1 // pred_check_branch
      %20 = sbr.rel (0) target = $region5
    $region4: #{tpu_custom_call.1} parent=1 // pred_region
      %s22 = ssub.s32 128, 128
      %23 = vsyncadd [#allocation3], %s22
      %s25 = sshll.u32 [#allocation2], 4
      %s26 = int_to_ptr.vmem [resolvable:$true] %s25
      %28 = dma.hbm_to_vmem [thread:$0]  %s0, 128, %s26, [#allocation3]
    $region5: #{tpu_custom_call.1} parent=1 // pred_fallthru
      _
    // Predicated region
    $region6: #{tpu_custom_call.1} parent=1 // pred_check
      _
    $region7: #{tpu_custom_call.1} parent=1 // pred_check_branch
      %30 = sbr.rel (0) target = $region9
    $region8: #{tpu_custom_call.1} parent=1 // pred_region
      %s32 = ssub.s32 832, 832
      %33 = vsyncadd [#allocation6], %s32
      %s34 = sshll.u32 [#allocation5], 4
      %s35 = int_to_ptr.vmem [resolvable:$true] %s34
      %40 = dma.hbm_to_vmem [thread:$0]  %s1, 832, %s35, [#allocation6], 64, 64, 4
    $region9: #{tpu_custom_call.1} parent=1 // pred_fallthru
      _
    // Predicated region
    $region10: #{tpu_custom_call.1} parent=1 // pred_check
      _
    $region11: #{tpu_custom_call.1} parent=1 // pred_check_branch
      %42 = sbr.rel (0) target = $region13
    $region12: #{tpu_custom_call.1} parent=1 // pred_region
      _
    $region13: #{tpu_custom_call.1} parent=1 // pred_fallthru
      _
    // Predicated region
    $region14: #{tpu_custom_call.1} parent=1 // pred_check
      _
    $region15: #{tpu_custom_call.1} parent=1 // pred_check_branch
      %44 = sbr.rel (0) target = $region17
    $region16: #{tpu_custom_call.1} parent=1 // pred_region
      %s46 = ssub.s32 1024, 1024
      %47 = vsyncadd [#allocation6], %s46
      %s48 = sshll.u32 [#allocation7], 4
      %s49 = int_to_ptr.vmem [resolvable:$true] %s48
      %54 = dma.hbm_to_vmem [thread:$0]  %s3, 1024, %s49, [#allocation6], 64, 64, 4
    $region17: #{tpu_custom_call.1} parent=1 // pred_fallthru
      _
    // Predicated region
    $region18: #{tpu_custom_call.1} parent=1 // pred_check
      _
    $region19: #{tpu_custom_call.1} parent=1 // pred_check_branch
      %56 = sbr.rel (0) target = $region21
    $region20: #{tpu_custom_call.1} parent=1 // pred_region
      _
    $region21: #{tpu_custom_call.1} parent=1 // pred_fallthru
      _
    // Predicated region
    $region22: #{tpu_custom_call.1} parent=1 // pred_check
      _
    $region23: #{tpu_custom_call.1} parent=1 // pred_check_branch
      %58 = sbr.rel (0) target = $region25
    $region24: #{tpu_custom_call.1} parent=1 // pred_region
      %s60 = ssub.s32 1024, 1024
      %61 = vsyncadd [#allocation9], %s60
      %s62 = sshll.u32 [#allocation8], 4
      %s63 = int_to_ptr.vmem [resolvable:$true] %s62
      %68 = dma.hbm_to_vmem [thread:$0]  %s5, 1024, %s63, [#allocation9], 64, 64, 4
    $region25: #{tpu_custom_call.1} parent=1 // pred_fallthru
      _
    // Predicated region
    $region26: #{tpu_custom_call.1} parent=1 // pred_check
      _
    $region27: #{tpu_custom_call.1} parent=1 // pred_check_branch
      %70 = sbr.rel (0) target = $region29
    $region28: #{tpu_custom_call.1} parent=1 // pred_region
      _
    $region29: #{tpu_custom_call.1} parent=1 // pred_fallthru
      _
    // Predicated region
    $region30: #{tpu_custom_call.1} parent=1 // pred_check
      _
    $region31: #{tpu_custom_call.1} parent=1 // pred_check_branch
      %72 = sbr.rel (0) target = $region33
    $region32: #{tpu_custom_call.1} parent=1 // pred_region
      %73 = dma.done [#allocation3], 128
    $region33: #{tpu_custom_call.1} parent=1 // pred_fallthru
      _
    // Predicated region
    $region34: #{tpu_custom_call.1} parent=1 // pred_check
      _
    $region35: #{tpu_custom_call.1} parent=1 // pred_check_branch
      %75 = sbr.rel (0) target = $region37
    $region36: #{tpu_custom_call.1} parent=1 // pred_region
      %76 = dma.done [#allocation6], 832
    $region37: #{tpu_custom_call.1} parent=1 // pred_fallthru
      _
    // Predicated region
    $region38: #{tpu_custom_call.1} parent=1 // pred_check
      _
    $region39: #{tpu_custom_call.1} parent=1 // pred_check_branch
      %78 = sbr.rel (0) target = $region41
    $region40: #{tpu_custom_call.1} parent=1 // pred_region
      %79 = dma.done [#allocation6], 1024
    $region41: #{tpu_custom_call.1} parent=1 // pred_fallthru
      _
    // Predicated region
    $region42: #{tpu_custom_call.1} parent=1 // pred_check
      _
    $region43: #{tpu_custom_call.1} parent=1 // pred_check_branch
      %81 = sbr.rel (0) target = $region45
    $region44: #{tpu_custom_call.1} parent=1 // pred_region
      %82 = dma.done [#allocation9], 1024
    $region45: #{tpu_custom_call.1} parent=1 // pred_fallthru
      _
    %v84 = vld [vmem:[#allocation2] sm:$0xff]
    %v85 = vpack.c.bf16 %v84, %v84
    %v86 = vld [vmem:[#allocation5] sm:$0xf]
    %v87 = vld [vmem:[#allocation5 + $0x4] sm:$0xf]
    %v88 = vld [vmem:[#allocation5 + $0x8] sm:$0xf]
    %v89 = vld [vmem:[#allocation5 + $0xc] sm:$0xf]
    %v90 = vld [vmem:[#allocation5 + $0x10] sm:$0xf]
    %v91 = vld [vmem:[#allocation5 + $0x14] sm:$0xf]
    %v92 = vld [vmem:[#allocation5 + $0x18] sm:$0xf]
    %v93 = vld [vmem:[#allocation5 + $0x1c] sm:$0xf]
    %v94 = vld [vmem:[#allocation5 + $0x20] sm:$0xf]
    %v95 = vld [vmem:[#allocation5 + $0x24] sm:$0xf]
    %v96 = vld [vmem:[#allocation5 + $0x28] sm:$0xf]
    %v97 = vld [vmem:[#allocation5 + $0x2c] sm:$0xf]
    %v98 = vld [vmem:[#allocation5 + $0x30] sm:$0x3]
    %v99 = vld [vmem:[%s2] sm:$0x1]
    %v101 = vlaneseq
    %v102 = vshrl.u32 %v101, 7
    %v103 = vsub.s32 0, %v102
    %v104 = vrot.slane %v99, %v103
    %v119 = vunpack.c.l.b16 %v86
    %v120 = vunpack.c.l.b16 %v87
    %v121 = vunpack.c.l.b16 %v88
    %v122 = vunpack.c.l.b16 %v89
    %v123 = vunpack.c.l.b16 %v90
    %v124 = vunpack.c.l.b16 %v91
    %v125 = vunpack.c.l.b16 %v92
    %v126 = vunpack.c.l.b16 %v93
    %v127 = vunpack.c.l.b16 %v94
    %v128 = vunpack.c.l.b16 %v95
    %v129 = vunpack.c.l.b16 %v96
    %v130 = vunpack.c.l.b16 %v97
    %v131 = vunpack.c.l.b16 %v98
    %v132 = vpack.c.b16 %v120, %v119
    %v133 = vpack.c.b16 %v122, %v121
    %v134 = vpack.c.b16 %v124, %v123
    %v135 = vpack.c.b16 %v126, %v125
    %v136 = vpack.c.b16 %v128, %v127
    %v137 = vpack.c.b16 %v130, %v129
    %v138 = vpack.c.b16 %v131, %v131
    %vm145 = vcmask 818176
    %v147 = vsel %vm145, %v85, 0
    %vm149 = vcmask 1041408
    %v151 = vsel %vm149, %v138, 0
    %153 = vmatprep.subr.bf16.mxu0 0
    %154 = vmatpush1.bf16.msra.mxu0 %v132
    %155 = vmatprep.subr.bf16.mxu0 0
    %156 = vmatpush1.bf16.msra.mxu0 %v133
    %157 = vmatprep.subr.bf16.mxu0 0
    %158 = vmatpush1.bf16.msra.mxu0 %v134
    %159 = vmatprep.subr.bf16.mxu0 0
    %160 = vmatpush1.bf16.msra.mxu0 %v135
    %161 = vmatprep.subr.bf16.mxu0 0
    %162 = vmatpush1.bf16.msra.mxu0 %v136
    %163 = vmatprep.subr.bf16.mxu0 0
    %164 = vmatpush1.bf16.msra.mxu0 %v137
    %165 = vmatprep.subr.bf16.mxu0 0
    %166 = vmatpush1.bf16.msra.mxu0 %v151
    %167 = vmatprep.subr.bf16.mxu0 0
    %168 = vmatpush1.bf16.msra.mxu0 0
    %169 = vmatprep.subr.bf16.mxu0 0
    %170 = vmatpush1.bf16.msra.mxu0 0
    %171 = vmatprep.subr.bf16.mxu0 0
    %172 = vmatpush1.bf16.msra.mxu0 0
    %173 = vmatprep.subr.bf16.mxu0 0
    %174 = vmatpush1.bf16.msra.mxu0 0
    %175 = vmatprep.subr.bf16.mxu0 0
    %176 = vmatpush1.bf16.msra.mxu0 0
    %177 = vmatprep.subr.bf16.mxu0 0
    %178 = vmatpush1.bf16.msra.mxu0 0
    %179 = vmatprep.subr.bf16.mxu0 0
    %180 = vmatpush1.bf16.msra.mxu0 0
    %181 = vmatprep.subr.bf16.mxu0 0
    %182 = vmatpush1.bf16.msra.mxu0 0
    %183 = vmatprep.subr.bf16.mxu0 0
    %184 = vmatpush1.bf16.msra.mxu0 0
    %185 = vmatprep.mubr.bf16.mxu0 0
    %186 = vmatmul.mubr.bf16.gmra.mrb[0].mxu0 %v147
    %v187 = vpop.f32.mrb[0].mxu0
    %v188 = vadd.f32 %v104, %v187
    %v189 = vpop.f32.mrb[0].mxu0
    %v190 = vpop.f32.mrb[0].mxu0
    %v191 = vpop.f32.mrb[0].mxu0
    %192 = vdwg.mxu0
    %v193 = vmax.f32 %v188, 0.0
    %v194 = vpack.c.bf16 %v193, %v193
    %v195 = vld [vmem:[#allocation7] sm:$0xf]
    %v196 = vld [vmem:[#allocation7 + $0x4] sm:$0xf]
    %v197 = vld [vmem:[#allocation7 + $0x8] sm:$0xf]
    %v198 = vld [vmem:[#allocation7 + $0xc] sm:$0xf]
    %v199 = vld [vmem:[#allocation7 + $0x10] sm:$0xf]
    %v200 = vld [vmem:[#allocation7 + $0x14] sm:$0xf]
    %v201 = vld [vmem:[#allocation7 + $0x18] sm:$0xf]
    %v202 = vld [vmem:[#allocation7 + $0x1c] sm:$0xf]
    %v203 = vld [vmem:[#allocation7 + $0x20] sm:$0xf]
    %v204 = vld [vmem:[#allocation7 + $0x24] sm:$0xf]
    %v205 = vld [vmem:[#allocation7 + $0x28] sm:$0xf]
    %v206 = vld [vmem:[#allocation7 + $0x2c] sm:$0xf]
    %v207 = vld [vmem:[#allocation7 + $0x30] sm:$0xf]
    %v208 = vld [vmem:[#allocation7 + $0x34] sm:$0xf]
    %v209 = vld [vmem:[#allocation7 + $0x38] sm:$0xf]
    %v210 = vld [vmem:[#allocation7 + $0x3c] sm:$0xf]
    %v211 = vld [vmem:[%s4] sm:$0x1]
    %v213 = vlaneseq
    %v214 = vshrl.u32 %v213, 7
    %v215 = vsub.s32 0, %v214
    %v216 = vrot.slane %v211, %v215
    %v234 = vunpack.c.l.b16 %v195
    %v235 = vunpack.c.l.b16 %v196
    %v236 = vunpack.c.l.b16 %v197
    %v237 = vunpack.c.l.b16 %v198
    %v238 = vunpack.c.l.b16 %v199
    %v239 = vunpack.c.l.b16 %v200
    %v240 = vunpack.c.l.b16 %v201
    %v241 = vunpack.c.l.b16 %v202
    %v242 = vunpack.c.l.b16 %v203
    %v243 = vunpack.c.l.b16 %v204
    %v244 = vunpack.c.l.b16 %v205
    %v245 = vunpack.c.l.b16 %v206
    %v246 = vunpack.c.l.b16 %v207
    %v247 = vunpack.c.l.b16 %v208
    %v248 = vunpack.c.l.b16 %v209
    %v249 = vunpack.c.l.b16 %v210
    %v250 = vpack.c.b16 %v235, %v234
    %v251 = vpack.c.b16 %v237, %v236
    %v252 = vpack.c.b16 %v239, %v238
    %v253 = vpack.c.b16 %v241, %v240
    %v254 = vpack.c.b16 %v243, %v242
    %v255 = vpack.c.b16 %v245, %v244
    %v256 = vpack.c.b16 %v247, %v246
    %v257 = vpack.c.b16 %v249, %v248
    %266 = vmatprep.subr.bf16.mxu0 0
    %267 = vmatpush1.bf16.msra.mxu0 %v250
    %268 = vmatprep.subr.bf16.mxu0 0
    %269 = vmatpush1.bf16.msra.mxu0 %v251
    %270 = vmatprep.subr.bf16.mxu0 0
    %271 = vmatpush1.bf16.msra.mxu0 %v252
    %272 = vmatprep.subr.bf16.mxu0 0
    %273 = vmatpush1.bf16.msra.mxu0 %v253
    %274 = vmatprep.subr.bf16.mxu0 0
    %275 = vmatpush1.bf16.msra.mxu0 %v254
    %276 = vmatprep.subr.bf16.mxu0 0
    %277 = vmatpush1.bf16.msra.mxu0 %v255
    %278 = vmatprep.subr.bf16.mxu0 0
    %279 = vmatpush1.bf16.msra.mxu0 %v256
    %280 = vmatprep.subr.bf16.mxu0 0
    %281 = vmatpush1.bf16.msra.mxu0 %v257
    %282 = vmatprep.subr.bf16.mxu0 0
    %283 = vmatpush1.bf16.msra.mxu0 0
    %284 = vmatprep.subr.bf16.mxu0 0
    %285 = vmatpush1.bf16.msra.mxu0 0
    %286 = vmatprep.subr.bf16.mxu0 0
    %287 = vmatpush1.bf16.msra.mxu0 0
    %288 = vmatprep.subr.bf16.mxu0 0
    %289 = vmatpush1.bf16.msra.mxu0 0
    %290 = vmatprep.subr.bf16.mxu0 0
    %291 = vmatpush1.bf16.msra.mxu0 0
    %292 = vmatprep.subr.bf16.mxu0 0
    %293 = vmatpush1.bf16.msra.mxu0 0
    %294 = vmatprep.subr.bf16.mxu0 0
    %295 = vmatpush1.bf16.msra.mxu0 0
    %296 = vmatprep.subr.bf16.mxu0 0
    %297 = vmatpush1.bf16.msra.mxu0 0
    %298 = vmatprep.mubr.bf16.mxu0 0
    %299 = vmatmul.mubr.bf16.gmra.mrb[0].mxu0 %v194
    %v300 = vpop.f32.mrb[0].mxu0
    %v301 = vadd.f32 %v216, %v300
    %v302 = vpop.f32.mrb[0].mxu0
    %v303 = vpop.f32.mrb[0].mxu0
    %v304 = vpop.f32.mrb[0].mxu0
    %305 = vdwg.mxu0
    %v306 = vmax.f32 %v301, 0.0
    %v307 = vpack.c.bf16 %v306, %v306
    %308 = vst [vmem:[#allocation11] sm:$0xf] %v307
    %v309 = vld [vmem:[#allocation8] sm:$0xf]
    %v310 = vld [vmem:[#allocation8 + $0x4] sm:$0xf]
    %v311 = vld [vmem:[#allocation8 + $0x8] sm:$0xf]
    %v312 = vld [vmem:[#allocation8 + $0xc] sm:$0xf]
    %v313 = vld [vmem:[#allocation8 + $0x10] sm:$0xf]
    %v314 = vld [vmem:[#allocation8 + $0x14] sm:$0xf]
    %v315 = vld [vmem:[#allocation8 + $0x18] sm:$0xf]
    %v316 = vld [vmem:[#allocation8 + $0x1c] sm:$0xf]
    %v317 = vld [vmem:[#allocation8 + $0x20] sm:$0xf]
    %v318 = vld [vmem:[#allocation8 + $0x24] sm:$0xf]
    %v319 = vld [vmem:[#allocation8 + $0x28] sm:$0xf]
    %v320 = vld [vmem:[#allocation8 + $0x2c] sm:$0xf]
    %v321 = vld [vmem:[#allocation8 + $0x30] sm:$0xf]
    %v322 = vld [vmem:[#allocation8 + $0x34] sm:$0xf]
    %v323 = vld [vmem:[#allocation8 + $0x38] sm:$0xf]
    %v324 = vld [vmem:[#allocation8 + $0x3c] sm:$0xf]
    %v325 = vld [vmem:[%s6] sm:$0x1]
    %v327 = vlaneseq
    %v328 = vshrl.u32 %v327, 7
    %v329 = vsub.s32 0, %v328
    %v330 = vrot.slane %v325, %v329
    %v348 = vunpack.c.l.b16 %v309
    %v349 = vunpack.c.l.b16 %v310
    %v350 = vunpack.c.l.b16 %v311
    %v351 = vunpack.c.l.b16 %v312
    %v352 = vunpack.c.l.b16 %v313
    %v353 = vunpack.c.l.b16 %v314
    %v354 = vunpack.c.l.b16 %v315
    %v355 = vunpack.c.l.b16 %v316
    %v356 = vunpack.c.l.b16 %v317
    %v357 = vunpack.c.l.b16 %v318
    %v358 = vunpack.c.l.b16 %v319
    %v359 = vunpack.c.l.b16 %v320
    %v360 = vunpack.c.l.b16 %v321
    %v361 = vunpack.c.l.b16 %v322
    %v362 = vunpack.c.l.b16 %v323
    %v363 = vunpack.c.l.b16 %v324
    %v364 = vpack.c.b16 %v349, %v348
    %v365 = vpack.c.b16 %v351, %v350
    %v366 = vpack.c.b16 %v353, %v352
    %v367 = vpack.c.b16 %v355, %v354
    %v368 = vpack.c.b16 %v357, %v356
    %v369 = vpack.c.b16 %v359, %v358
    %v370 = vpack.c.b16 %v361, %v360
    %v371 = vpack.c.b16 %v363, %v362
    %380 = vmatprep.subr.bf16.mxu0 0
    %381 = vmatpush1.bf16.msra.mxu0 %v364
    %382 = vmatprep.subr.bf16.mxu0 0
    %383 = vmatpush1.bf16.msra.mxu0 %v365
    %384 = vmatprep.subr.bf16.mxu0 0
    %385 = vmatpush1.bf16.msra.mxu0 %v366
    %386 = vmatprep.subr.bf16.mxu0 0
    %387 = vmatpush1.bf16.msra.mxu0 %v367
    %388 = vmatprep.subr.bf16.mxu0 0
    %389 = vmatpush1.bf16.msra.mxu0 %v368
    %390 = vmatprep.subr.bf16.mxu0 0
    %391 = vmatpush1.bf16.msra.mxu0 %v369
    %392 = vmatprep.subr.bf16.mxu0 0
    %393 = vmatpush1.bf16.msra.mxu0 %v370
    %394 = vmatprep.subr.bf16.mxu0 0
    %395 = vmatpush1.bf16.msra.mxu0 %v371
    %396 = vmatprep.subr.bf16.mxu0 0
    %397 = vmatpush1.bf16.msra.mxu0 0
    %398 = vmatprep.subr.bf16.mxu0 0
    %399 = vmatpush1.bf16.msra.mxu0 0
    %400 = vmatprep.subr.bf16.mxu0 0
    %401 = vmatpush1.bf16.msra.mxu0 0
    %402 = vmatprep.subr.bf16.mxu0 0
    %403 = vmatpush1.bf16.msra.mxu0 0
    %404 = vmatprep.subr.bf16.mxu0 0
    %405 = vmatpush1.bf16.msra.mxu0 0
    %406 = vmatprep.subr.bf16.mxu0 0
    %407 = vmatpush1.bf16.msra.mxu0 0
    %408 = vmatprep.subr.bf16.mxu0 0
    %409 = vmatpush1.bf16.msra.mxu0 0
    %410 = vmatprep.subr.bf16.mxu0 0
    %411 = vmatpush1.bf16.msra.mxu0 0
    %412 = vmatprep.mubr.bf16.mxu0 0
    %413 = vmatmul.mubr.bf16.gmra.mrb[0].mxu0 %v307
    %v414 = vpop.f32.mrb[0].mxu0
    %v415 = vadd.f32 %v330, %v414
    %v416 = vpop.f32.mrb[0].mxu0
    %v417 = vpop.f32.mrb[0].mxu0
    %v418 = vpop.f32.mrb[0].mxu0
    %419 = vdwg.mxu0
    %v420 = vpack.c.bf16 %v415, %v415
    %421 = vst [vmem:[#allocation10] sm:$0xf] %v420
    // Predicated region
    $region46: #{tpu_custom_call.1} parent=1 // pred_check
      _
    $region47: #{tpu_custom_call.1} parent=1 // pred_check_branch
      %423 = sbr.rel (0) target = $region49
    $region48: #{tpu_custom_call.1} parent=1 // pred_region
      %s425 = ssub.s32 64, 64
      %426 = vsyncadd [#allocation4], %s425
      %s428 = sshll.u32 [#allocation10], 4
      %s429 = int_to_ptr.vmem [resolvable:$true] %s428
      %431 = dma.vmem_to_hbm [thread:$0]  %s429, 64, %s7, [#allocation4]
    $region49: #{tpu_custom_call.1} parent=1 // pred_fallthru
      _
    // Predicated region
    $region50: #{tpu_custom_call.1} parent=1 // pred_check
      _
    $region51: #{tpu_custom_call.1} parent=1 // pred_check_branch
      %433 = sbr.rel (0) target = $region53
    $region52: #{tpu_custom_call.1} parent=1 // pred_region
      %s435 = ssub.s32 64, 64
      %436 = vsyncadd [#allocation12], %s435
      %s438 = sshll.u32 [#allocation11], 4
      %s439 = int_to_ptr.vmem [resolvable:$true] %s438
      %441 = dma.vmem_to_hbm [thread:$0]  %s439, 64, %s8, [#allocation12]
    $region53: #{tpu_custom_call.1} parent=1 // pred_fallthru
      _
    // Predicated region
    $region54: #{tpu_custom_call.1} parent=1 // pred_check
      _
    $region55: #{tpu_custom_call.1} parent=1 // pred_check_branch
      %443 = sbr.rel (0) target = $region57
    $region56: #{tpu_custom_call.1} parent=1 // pred_region
      %444 = dma.done [#allocation4], 64
    $region57: #{tpu_custom_call.1} parent=1 // pred_fallthru
      _
    // Predicated region
    $region58: #{tpu_custom_call.1} parent=1 // pred_check
      _
    $region59: #{tpu_custom_call.1} parent=1 // pred_check_branch
      %446 = sbr.rel (0) target = $region61
    $region60: #{tpu_custom_call.1} parent=1 // pred_region
      %447 = dma.done [#allocation12], 64
    $region61: #{tpu_custom_call.1} parent=1 // pred_fallthru
      _
    %448 = vsyncpa [#allocation3], 1
    %449 = vsyncpa [#allocation6], 1
    %450 = vsyncpa [#allocation9], 1
    %451 = vsyncpa [#allocation4], 1
    %452 = vsyncpa [#allocation12], 1

</llo_original>
